<compile_context>
chip_gen: v7x
topology: tpu7x:2x2x1
jax: 0.10.0
libtpu: 0.0.40
codegen_flags: <defaults>
</compile_context>

<pallas_src>
import jax
import jax.numpy as jnp
from jax.experimental import pallas as pl
from jax.experimental.pallas import tpu as pltpu


def _choose_row_tile(n: int) -> int:
    """Largest row tile TM (multiple of 128, dividing n, TM < n so the grid has
    >= 2 steps and can pipeline) whose per-step working set fits comfortably in
    scoped VMEM: ~3 blocks of TM*n f32, double-buffered, <= ~24 MiB."""
    budget = 24 << 20
    for tm in (1024, 512, 256, 128):
        if n % tm == 0 and tm < n and 3 * tm * n * 4 * 2 <= budget:
            return tm
    return n  # tiny / odd n: single full tile (still correct)


def _degree_kernel(p_row_ref, p_col_ref, r_ref):
    # A_sym rows for this tile: relu((P[rows, :] + P[:, rows]^T) / 2)
    p_row = p_row_ref[...].astype(jnp.float32)          # (TM, n)
    p_col = p_col_ref[...].astype(jnp.float32)          # (n, TM)
    a = jnp.maximum((p_row + p_col.T) * 0.5, 0.0)       # (TM, n)
    # Degree includes the +1 self-loop, so deg >= 1 and rsqrt is never inf
    # (the torch isinf guard is therefore a no-op and dropped).
    deg = jnp.sum(a, axis=1, keepdims=True) + 1.0       # (TM, 1)
    r_ref[...] = jax.lax.rsqrt(deg)


def _scale_kernel(p_row_ref, p_col_ref, r_rows_ref, r_all_ref, o_ref):
    tm, n = o_ref.shape
    i = pl.program_id(0)

    p_row = p_row_ref[...].astype(jnp.float32)           # (TM, n)
    p_col = p_col_ref[...].astype(jnp.float32)           # (n, TM)
    a = jnp.maximum((p_row + p_col.T) * 0.5, 0.0)        # (TM, n)

    r_i = r_rows_ref[...]                                 # (TM, 1)
    r_j = r_all_ref[...]                                  # (1, n)

    # Off-diagonal part: r_i * A_ij * r_j (pure VPU, lane-dense store).
    o_ref[...] = (r_i * a * r_j).astype(o_ref.dtype)

    # Self-loop (+I) contributes r_g^2 only on the diagonal, which intersects this
    # row tile in columns [i*TM, i*TM + TM). Patch just that (TM, TM) sub-block.
    col0 = pl.multiple_of(i * tm, tm)
    r_j_diag = r_all_ref[:, pl.ds(col0, tm)]               # (1, TM)
    rows = jax.lax.broadcasted_iota(jnp.int32, (tm, tm), 0)
    cols = jax.lax.broadcasted_iota(jnp.int32, (tm, tm), 1)
    diag_add = jnp.where(rows == cols, r_i * r_j_diag, 0.0)
    cur = o_ref[:, pl.ds(col0, tm)].astype(jnp.float32)
    o_ref[:, pl.ds(col0, tm)] = (cur + diag_add).astype(o_ref.dtype)


def parametered_graph_forward(paramed_adj_omics: jax.Array) -> jax.Array:
    """Pallas implementation of Parametered_Graph.forward()."""
    n = paramed_adj_omics.shape[0]
    assert paramed_adj_omics.shape == (n, n)
    out_dtype = paramed_adj_omics.dtype
    tm = _choose_row_tile(n)
    grid = (n // tm,)

    compiler_params = pltpu.CompilerParams(
        dimension_semantics=("parallel",),        # shard row tiles across TCs (v7x)
        vmem_limit_bytes=48 * 1024 * 1024,        # headroom over 16/32 MiB scoped defaults
    )

    # Pass 1: r = (1 + rowsum(relu((P + P^T)/2)))^{-1/2}, an (n, 1) vector.
    r = pl.pallas_call(
        _degree_kernel,
        out_shape=jax.ShapeDtypeStruct((n, 1), jnp.float32),
        grid=grid,
        in_specs=[
            pl.BlockSpec((tm, n), lambda i: (i, 0)),   # row block of P
            pl.BlockSpec((n, tm), lambda i: (0, i)),   # column block of P
        ],
        out_specs=pl.BlockSpec((tm, 1), lambda i: (i, 0)),
        compiler_params=compiler_params,
        cost_estimate=pl.CostEstimate(
            flops=4 * n * n, transcendentals=n, bytes_accessed=8 * n * n),
    )(paramed_adj_omics, paramed_adj_omics)

    r_row = r.reshape(1, n)  # lane-oriented copy for the column scale factor

    # Pass 2: out_ij = r_i * (relu((P_ij + P_ji)/2) + delta_ij) * r_j.
    out = pl.pallas_call(
        _scale_kernel,
        out_shape=jax.ShapeDtypeStruct((n, n), out_dtype),
        grid=grid,
        in_specs=[
            pl.BlockSpec((tm, n), lambda i: (i, 0)),   # row block of P
            pl.BlockSpec((n, tm), lambda i: (0, i)),   # column block of P
            pl.BlockSpec((tm, 1), lambda i: (i, 0)),   # r for this tile's rows
            pl.BlockSpec((1, n), lambda i: (0, 0)),    # full r, stays resident
        ],
        out_specs=pl.BlockSpec((tm, n), lambda i: (i, 0)),
        compiler_params=compiler_params,
        cost_estimate=pl.CostEstimate(
            flops=6 * n * n, transcendentals=0, bytes_accessed=12 * n * n),
    )(paramed_adj_omics, paramed_adj_omics, r, r_row)
    return out


def _reference_forward(p: jax.Array) -> jax.Array:
    """Pure-JAX reference mirroring the PyTorch module exactly."""
    a = jnp.maximum((p + p.T) / 2.0, 0.0)
    a = a + jnp.eye(p.shape[0], dtype=a.dtype)
    rowsum = a.sum(axis=1)
    r_inv = rowsum ** (-0.5)
    r_inv = jnp.where(jnp.isinf(r_inv), 0.0, r_inv)
    r_mat_inv = jnp.diag(r_inv)
    hi = jax.lax.Precision.HIGHEST
    return jnp.matmul(jnp.matmul(r_mat_inv, a, precision=hi), r_mat_inv, precision=hi)


if __name__ == "__main__":
    # Deterministic synthetic "adjacency" the nn.Parameter is initialized from
    # (the module copies self.adj into the parameter at __init__).
    n = 256  # small demo size; exercises a 2-step row-tiled grid (TM = 128)
    key = jax.random.PRNGKey(0)
    raw = jax.random.uniform(key, (n, n), dtype=jnp.float32)
    adj_init = jnp.where(raw > 0.7, raw, 0.0)   # sparse-ish raw adjacency
    paramed_adj_omics = adj_init                # parameter init = copy of adj

    out = jax.block_until_ready(parametered_graph_forward(paramed_adj_omics))

    ref = _reference_forward(paramed_adj_omics)
    assert out.shape == (n, n) and out.dtype == paramed_adj_omics.dtype
    assert jnp.allclose(out, ref, atol=1e-5, rtol=1e-4), "mismatch vs reference"

    print("KERNEL_OK")
</pallas_src>

<mosaic_0001>
module attributes {stable_mosaic.version = 11 : i64} {
  func.func @_degree_kernel(%arg0: i32, %arg1: memref<128x256xf32, #tpu.memory_space<vmem>>, %arg2: memref<256x128xf32, #tpu.memory_space<vmem>>, %arg3: memref<128x1xf32, #tpu.memory_space<vmem>>) attributes {dimension_semantics = [#tpu.dimension_semantics<parallel>], iteration_bounds = array<i64: 2>, scalar_prefetch = 0 : i64, scratch_operands = 0 : i64, tpu.core_type = #tpu.core_type<tc>, window_params = [{transform_indices = @transform_0, window_bounds = array<i64: 128, 256>}, {transform_indices = @transform_1, window_bounds = array<i64: 256, 128>}, {transform_indices = @transform_2, window_bounds = array<i64: 128, 1>}]} {
    %c0 = arith.constant 0 : index
    %c0_0 = arith.constant 0 : index
    %0 = vector.load %arg1[%c0, %c0_0] : memref<128x256xf32, #tpu.memory_space<vmem>>, vector<128x256xf32>
    %c0_1 = arith.constant 0 : index
    %c0_2 = arith.constant 0 : index
    %1 = vector.load %arg2[%c0_1, %c0_2] : memref<256x128xf32, #tpu.memory_space<vmem>>, vector<256x128xf32>
    %2 = tpu.transpose %1, [1, 0] : vector<256x128xf32> -> vector<128x256xf32>
    %3 = arith.addf %0, %2 : vector<128x256xf32>
    %cst = arith.constant 5.000000e-01 : f32
    %4 = vector.broadcast %cst : f32 to vector<128x256xf32>
    %5 = arith.mulf %3, %4 : vector<128x256xf32>
    %cst_3 = arith.constant 0.000000e+00 : f32
    %6 = vector.broadcast %cst_3 : f32 to vector<128x256xf32>
    %7 = arith.maximumf %5, %6 : vector<128x256xf32>
    %cst_4 = arith.constant dense<0.000000e+00> : vector<128xf32>
    %8 = vector.multi_reduction <add>, %7, %cst_4 [1] : vector<128x256xf32> to vector<128xf32>
    %9 = vector.shape_cast %8 : vector<128xf32> to vector<128x1xf32>
    %cst_5 = arith.constant 1.000000e+00 : f32
    %10 = vector.broadcast %cst_5 : f32 to vector<128x1xf32>
    %11 = arith.addf %9, %10 : vector<128x1xf32>
    %12 = math.rsqrt %11 : vector<128x1xf32>
    %c0_6 = arith.constant 0 : index
    %c0_7 = arith.constant 0 : index
    %13 = vector.load %arg3[%c0_6, %c0_7] : memref<128x1xf32, #tpu.memory_space<vmem>>, vector<128x1xf32>
    tpu.vector_store %arg3[%c0_6, %c0_7], %12 {strides = array<i32>} : memref<128x1xf32, #tpu.memory_space<vmem>>, vector<128x1xf32>,
    return
  }
  func.func @transform_0(%arg0: i32) -> (i32, i32) {
    %c0_i32 = arith.constant 0 : i32
    %c0_i32_0 = arith.constant 0 : i32
    return %arg0, %c0_i32 : i32, i32
  }
  func.func @transform_1(%arg0: i32) -> (i32, i32) {
    %c0_i32 = arith.constant 0 : i32
    %c0_i32_0 = arith.constant 0 : i32
    return %c0_i32, %arg0 : i32, i32
  }
  func.func @transform_2(%arg0: i32) -> (i32, i32) {
    %c0_i32 = arith.constant 0 : i32
    %c0_i32_0 = arith.constant 0 : i32
    return %arg0, %c0_i32 : i32, i32
  }
}

</mosaic_0001>

<llo_original>
// kernel: tpu_custom_call.1
$region0: #{tpu_custom_call.1}
  #allocation0 [shape = 'u32[]', space=smem, size = 0x4, offset = 0x4, fixed_abs, tag = 'smem constant byte address 0x4 - core index']
  #allocation1 [shape = 'u32[144,128]{1,0:T(1,128)}', space=vmem, size = 0x12000, scoped, tag = 'internal scratch']
  %s0 = inlined_call_operand.hbm [shape: f32[256,256], index: 0, kind: input, shape index: {}]
  %s1 = inlined_call_operand.hbm [shape: f32[256,256], index: 1, kind: input, shape index: {}]
  %s2 = inlined_call_operand.vmem [shape: f32[256,1], index: 2, kind: output, shape index: {}]
  %s3 = sld [smem:[#allocation0]]
  $region49: #{tpu_custom_call.1} parent=0
    _
  %s5 = ssub.s32 1, %s3
  %s6 = scalar_select 0, %s5, %s3
  $region1: #{tpu_custom_call.1} parent=0
    #allocation2 [shape = 'u8[262144]{0}', space=vmem, size = 0x40000, scoped, tag = 'input window, operand 0']
    #allocation3 [shape = 's32[2]{0}', space=sflag, size = 0x8, scoped, tag = 'scoped memory for tpu_custom_call.1']
    #allocation4 [shape = 'u8[262144]{0}', space=vmem, size = 0x40000, scoped, tag = 'input window, operand 1']
    #allocation5 [shape = 's32[2]{0}', space=sflag, size = 0x8, scoped, tag = 'scoped memory for tpu_custom_call.1']
    %7 = vsyncpa [#allocation3], 0
    %s8 = scalar_lea.sflag [#allocation3], 1
    %9 = vsyncpa %s8, 0
    %10 = vsyncpa [#allocation5], 0
    %s11 = scalar_lea.sflag [#allocation5], 1
    %12 = vsyncpa %s11, 0
    loop: start=0, step=1, limit=4
    $region2: #{tpu_custom_call.1} parent=1 // loop_pre_header
      _
    $region3: #{tpu_custom_call.1} parent=1 // loop_header
      %s14 = sphi 0, %s18
      %p15 = scmp.ge.s32.totalorder %s14, 4
      %s24 = sphi 0, %s26
      %s27 = sphi 0, %s24
      %s28 = sphi 0, %s27
      %s44 = sphi 0, %s28
      %s50 = sphi 0, %s52
      %s53 = sphi 0, %s50
      %s54 = sphi 0, %s53
      %s70 = sphi 0, %s54
      %s76 = sphi 0, %s78
      %s79 = sphi 0, %s76
      %s80 = sphi 0, %s79
      %s96 = sphi 0, %s80
    $region4: #{tpu_custom_call.1} parent=1 // loop_header_branch
      %17 = sbr.rel (%p15) target = $region8
    $region5: #{tpu_custom_call.1} parent=1 // loop_body
      %s19 = ssub.s32 %s14, 1
      %s20 = ssub.s32 %s14, 2
      %s21 = sadd.s32 %s14, 1
      %s22 = ssub.s32 %s14, %s21
      %p23 = scmp.eq.s32.totalorder %s22, 0
      %s25 = sadd.s32 %s24, 1
      %s26 = scalar_select %p23, %s24, %s25
      %p29 = pneg %p23
      %p30 = scmp.eq.s32.totalorder %s14, 1
      %p31 = por %p29, %p30
      %p32 = scmp.ne.s32.totalorder %s24, %s27
      %p33 = scmp.eq.s32.totalorder %s14, 0
      %p34 = por %p32, %p33
      %p35 = scmp.ne.s32.totalorder %s24, %s27
      %p36 = scmp.eq.s32.totalorder %s19, 1
      %p37 = por %p35, %p36
      %p38 = scmp.ne.s32.totalorder %s27, %s28
      %p39 = scmp.eq.s32.totalorder %s19, 0
      %p40 = por %p38, %p39
      %p41 = scmp.ne.s32.totalorder %s27, %s28
      %p42 = scmp.eq.s32.totalorder %s20, 1
      %p43 = por %p41, %p42
      %p45 = scmp.ne.s32.totalorder %s28, %s44
      %p46 = scmp.eq.s32.totalorder %s20, 0
      %p47 = por %p45, %p46
      %s48 = ssub.s32 %s14, %s21
      %p49 = scmp.eq.s32.totalorder %s48, 0
      %s51 = sadd.s32 %s50, 1
      %s52 = scalar_select %p49, %s50, %s51
      %p55 = pneg %p49
      %p56 = scmp.eq.s32.totalorder %s14, 1
      %p57 = por %p55, %p56
      %p58 = scmp.ne.s32.totalorder %s50, %s53
      %p59 = scmp.eq.s32.totalorder %s14, 0
      %p60 = por %p58, %p59
      %p61 = scmp.ne.s32.totalorder %s50, %s53
      %p62 = scmp.eq.s32.totalorder %s19, 1
      %p63 = por %p61, %p62
      %p64 = scmp.ne.s32.totalorder %s53, %s54
      %p65 = scmp.eq.s32.totalorder %s19, 0
      %p66 = por %p64, %p65
      %p67 = scmp.ne.s32.totalorder %s53, %s54
      %p68 = scmp.eq.s32.totalorder %s20, 1
      %p69 = por %p67, %p68
      %p71 = scmp.ne.s32.totalorder %s54, %s70
      %p72 = scmp.eq.s32.totalorder %s20, 0
      %p73 = por %p71, %p72
      %s74 = ssub.s32 %s14, %s21
      %p75 = scmp.eq.s32.totalorder %s74, 0
      %s77 = sadd.s32 %s76, 1
      %s78 = scalar_select %p75, %s76, %s77
      %p81 = pneg %p75
      %p82 = scmp.eq.s32.totalorder %s14, 1
      %p83 = por %p81, %p82
      %p84 = scmp.ne.s32.totalorder %s76, %s79
      %p85 = scmp.eq.s32.totalorder %s14, 0
      %p86 = por %p84, %p85
      %p87 = scmp.ne.s32.totalorder %s76, %s79
      %p88 = scmp.eq.s32.totalorder %s19, 1
      %p89 = por %p87, %p88
      %p90 = scmp.ne.s32.totalorder %s79, %s80
      %p91 = scmp.eq.s32.totalorder %s19, 0
      %p92 = por %p90, %p91
      %p93 = scmp.ne.s32.totalorder %s79, %s80
      %p94 = scmp.eq.s32.totalorder %s20, 1
      %p95 = por %p93, %p94
      %p97 = scmp.ne.s32.totalorder %s80, %s96
      %p98 = scmp.eq.s32.totalorder %s20, 0
      %p99 = por %p97, %p98
      %p100 = scmp.le.s32.totalorder 1, %s14
      %p101 = scmp.lt.s32.totalorder %s14, 3
      %p102 = pnand %p100, %p101
      %p103 = pneg %p102
      // Predicated region
      $region9: #{tpu_custom_call.1} parent=5 // pred_check
        _
      $region10: #{tpu_custom_call.1} parent=5 // pred_check_branch
        %105 = sbr.rel (%p102) target = $region12
      $region11: #{tpu_custom_call.1} parent=5 // pred_region
        %s106 = ssub.s32 %s14, 1
      $region12: #{tpu_custom_call.1} parent=5 // pred_fallthru
        _
      %p107 = scmp.lt.s32.totalorder %s14, 2
      // Predicated region
      $region13: #{tpu_custom_call.1} parent=5 // pred_check
        %p108 = pneg %p107
      $region14: #{tpu_custom_call.1} parent=5 // pred_check_branch
        %110 = sbr.rel (%p108) target = $region16
      $region15: #{tpu_custom_call.1} parent=5 // pred_region
        // Predicated region
        $region17: #{tpu_custom_call.1} parent=15 // pred_check
          %p111 = pneg %p34
        $region18: #{tpu_custom_call.1} parent=15 // pred_check_branch
          %113 = sbr.rel (%p111) target = $region20
        $region19: #{tpu_custom_call.1} parent=15 // pred_region
          %s114 = sand.u32 %s24, 1
          %s115 = scalar_lea.sflag [#allocation3], %s114
          %s116 = sand.u32 %s24, 1
          %s117 = smul.addr %s116, 256
          %s118 = scalar_lea.vmem [#allocation2], %s117
          %s119 = smul.u32 16, %s14
          %s121 = ssub.s32 4096, 4096
          %122 = vsyncadd %s115, %s121
          %s123 = smul.addr %s119, 2
          %s124 = smul.addr %s123, 128
          %s125 = scalar_lea.hbm %s0, %s124
          %s126 = sshll.u32 %s118, 4
          %s127 = int_to_ptr.vmem [resolvable:$true] %s126
          %132 = dma.hbm_to_vmem [thread:$0]  %s125, 4096, %s127, %s115, 256, 256, 16
        $region20: #{tpu_custom_call.1} parent=15 // pred_fallthru
          _
        // Predicated region
        $region21: #{tpu_custom_call.1} parent=15 // pred_check
          %p133 = pneg %p60
        $region22: #{tpu_custom_call.1} parent=15 // pred_check_branch
          %135 = sbr.rel (%p133) target = $region24
        $region23: #{tpu_custom_call.1} parent=15 // pred_region
          %s136 = sand.u32 %s50, 1
          %s137 = scalar_lea.sflag [#allocation5], %s136
          %s138 = sand.u32 %s50, 1
          %s139 = smul.addr %s138, 256
          %s140 = scalar_lea.vmem [#allocation4], %s139
          %s142 = ssub.s32 4096, 4096
          %143 = vsyncadd %s137, %s142
          %s144 = smul.addr %s14, 128
          %s145 = scalar_lea.hbm %s1, %s144
          %s146 = sshll.u32 %s140, 4
          %s147 = int_to_ptr.vmem [resolvable:$true] %s146
          %152 = dma.hbm_to_vmem [thread:$0]  %s145, 4096, %s147, %s137, 256, 128, 8
        $region24: #{tpu_custom_call.1} parent=15 // pred_fallthru
          _
      $region16: #{tpu_custom_call.1} parent=5 // pred_fallthru
        _
      %p153 = scmp.le.s32.totalorder 1, %s14
      %p154 = scmp.lt.s32.totalorder %s14, 3
      %p155 = pnand %p153, %p154
      %p156 = pneg %p155
      // Predicated region
      $region25: #{tpu_custom_call.1} parent=5 // pred_check
        _
      $region26: #{tpu_custom_call.1} parent=5 // pred_check_branch
        %158 = sbr.rel (%p155) target = $region28
      $region27: #{tpu_custom_call.1} parent=5 // pred_region
        %s159 = ssub.s32 %s14, 1
        %s160 = sand.u32 %s27, 1
        %s161 = scalar_lea.sflag [#allocation3], %s160
        %s162 = sand.u32 %s27, 1
        %s163 = smul.addr %s162, 256
        %s164 = scalar_lea.vmem [#allocation2], %s163
        // Predicated region
        $region29: #{tpu_custom_call.1} parent=27 // pred_check
          %p165 = pneg %p40
        $region30: #{tpu_custom_call.1} parent=27 // pred_check_branch
          %167 = sbr.rel (%p165) target = $region32
        $region31: #{tpu_custom_call.1} parent=27 // pred_region
          %168 = dma.done %s161, 4096
        $region32: #{tpu_custom_call.1} parent=27 // pred_fallthru
          _
        %s169 = sand.u32 %s53, 1
        %s170 = scalar_lea.sflag [#allocation5], %s169
        %s171 = sand.u32 %s53, 1
        %s172 = smul.addr %s171, 256
        %s173 = scalar_lea.vmem [#allocation4], %s172
        // Predicated region
        $region33: #{tpu_custom_call.1} parent=27 // pred_check
          %p174 = pneg %p66
        $region34: #{tpu_custom_call.1} parent=27 // pred_check_branch
          %176 = sbr.rel (%p174) target = $region36
        $region35: #{tpu_custom_call.1} parent=27 // pred_region
          %177 = dma.done %s170, 4096
        $region36: #{tpu_custom_call.1} parent=27 // pred_fallthru
          _
        %s178 = sand.u32 %s27, 1
        %s179 = scalar_lea.sflag [#allocation3], %s178
        %s180 = sand.u32 %s27, 1
        %s181 = smul.addr %s180, 256
        %s182 = scalar_lea.vmem [#allocation2], %s181
        %p183 = pneg %p40
        %p184 = pneg %p37
        %s185 = sand.u32 %s53, 1
        %s186 = scalar_lea.sflag [#allocation5], %s185
        %s187 = sand.u32 %s53, 1
        %s188 = smul.addr %s187, 256
        %s189 = scalar_lea.vmem [#allocation4], %s188
        %p190 = pneg %p66
        %p191 = pneg %p63
        %p192 = pneg %p92
        %p193 = pneg %p89
        %s194 = smul.u32 16, %s19
        %p195 = scmp.lt.s32.totalorder %s194, 31
        %s196 = scalar_select %p195, %s194, 31
        %s197 = smul.addr %s196, 8
        %s198 = scalar_lea.vmem %s2, %s197
        %s199 = smul.u32 16, %s19
        %s200 = smul.u32 16, %s19
        %p201 = scmp.lt.s32.totalorder %s200, 31
        %s202 = scalar_select %p201, %s200, 31
        %s203 = smul.addr %s202, 8
        %s204 = scalar_lea.vmem %s2, %s203
        %s205 = smul.u32 16, %s19
        %v206 = vld [vmem:[%s164] sm:$0xff]
        %v207 = vld [vmem:[%s164 + $0x8] sm:$0xff]
        %v208 = vld [vmem:[%s164 + $0x10] sm:$0xff]
        %v209 = vld [vmem:[%s164 + $0x18] sm:$0xff]
        %v210 = vld [vmem:[%s164 + $0x20] sm:$0xff]
        %v211 = vld [vmem:[%s164 + $0x28] sm:$0xff]
        %v212 = vld [vmem:[%s164 + $0x30] sm:$0xff]
        %v213 = vld [vmem:[%s164 + $0x38] sm:$0xff]
        %v214 = vld [vmem:[%s164 + $0x40] sm:$0xff]
        %v215 = vld [vmem:[%s164 + $0x48] sm:$0xff]
        %v216 = vld [vmem:[%s164 + $0x50] sm:$0xff]
        %v217 = vld [vmem:[%s164 + $0x58] sm:$0xff]
        %v218 = vld [vmem:[%s164 + $0x60] sm:$0xff]
        %v219 = vld [vmem:[%s164 + $0x68] sm:$0xff]
        %v220 = vld [vmem:[%s164 + $0x70] sm:$0xff]
        %v221 = vld [vmem:[%s164 + $0x78] sm:$0xff]
        %v222 = vld [vmem:[%s164 + $0x80] sm:$0xff]
        %v223 = vld [vmem:[%s164 + $0x88] sm:$0xff]
        %v224 = vld [vmem:[%s164 + $0x90] sm:$0xff]
        %v225 = vld [vmem:[%s164 + $0x98] sm:$0xff]
        %v226 = vld [vmem:[%s164 + $0xa0] sm:$0xff]
        %v227 = vld [vmem:[%s164 + $0xa8] sm:$0xff]
        %v228 = vld [vmem:[%s164 + $0xb0] sm:$0xff]
        %v229 = vld [vmem:[%s164 + $0xb8] sm:$0xff]
        %v230 = vld [vmem:[%s164 + $0xc0] sm:$0xff]
        %v231 = vld [vmem:[%s164 + $0xc8] sm:$0xff]
        %v232 = vld [vmem:[%s164 + $0xd0] sm:$0xff]
        %v233 = vld [vmem:[%s164 + $0xd8] sm:$0xff]
        %v234 = vld [vmem:[%s164 + $0xe0] sm:$0xff]
        %v235 = vld [vmem:[%s164 + $0xe8] sm:$0xff]
        %v236 = vld [vmem:[%s164 + $0xf0] sm:$0xff]
        %v237 = vld [vmem:[%s164 + $0xf8] sm:$0xff]
        %v238 = vld [vmem:[%s173] sm:$0xff]
        %v239 = vld [vmem:[%s173 + $0x8] sm:$0xff]
        %v240 = vld [vmem:[%s173 + $0x10] sm:$0xff]
        %v241 = vld [vmem:[%s173 + $0x18] sm:$0xff]
        %v242 = vld [vmem:[%s173 + $0x20] sm:$0xff]
        %v243 = vld [vmem:[%s173 + $0x28] sm:$0xff]
        %v244 = vld [vmem:[%s173 + $0x30] sm:$0xff]
        %v245 = vld [vmem:[%s173 + $0x38] sm:$0xff]
        %v246 = vld [vmem:[%s173 + $0x40] sm:$0xff]
        %v247 = vld [vmem:[%s173 + $0x48] sm:$0xff]
        %v248 = vld [vmem:[%s173 + $0x50] sm:$0xff]
        %v249 = vld [vmem:[%s173 + $0x58] sm:$0xff]
        %v250 = vld [vmem:[%s173 + $0x60] sm:$0xff]
        %v251 = vld [vmem:[%s173 + $0x68] sm:$0xff]
        %v252 = vld [vmem:[%s173 + $0x70] sm:$0xff]
        %v253 = vld [vmem:[%s173 + $0x78] sm:$0xff]
        %v254 = vld [vmem:[%s173 + $0x80] sm:$0xff]
        %v255 = vld [vmem:[%s173 + $0x88] sm:$0xff]
        %v256 = vld [vmem:[%s173 + $0x90] sm:$0xff]
        %v257 = vld [vmem:[%s173 + $0x98] sm:$0xff]
        %v258 = vld [vmem:[%s173 + $0xa0] sm:$0xff]
        %v259 = vld [vmem:[%s173 + $0xa8] sm:$0xff]
        %v260 = vld [vmem:[%s173 + $0xb0] sm:$0xff]
        %v261 = vld [vmem:[%s173 + $0xb8] sm:$0xff]
        %v262 = vld [vmem:[%s173 + $0xc0] sm:$0xff]
        %v263 = vld [vmem:[%s173 + $0xc8] sm:$0xff]
        %v264 = vld [vmem:[%s173 + $0xd0] sm:$0xff]
        %v265 = vld [vmem:[%s173 + $0xd8] sm:$0xff]
        %v266 = vld [vmem:[%s173 + $0xe0] sm:$0xff]
        %v267 = vld [vmem:[%s173 + $0xe8] sm:$0xff]
        %v268 = vld [vmem:[%s173 + $0xf0] sm:$0xff]
        %v269 = vld [vmem:[%s173 + $0xf8] sm:$0xff]
        %270 = vxpose.xlu0.b32.start [1/16] %v238, 128
        %271 = vxpose.xlu0.b32.cont [2/16] %v239, 128
        %272 = vxpose.xlu0.b32.cont [3/16] %v240, 128
        %273 = vxpose.xlu0.b32.cont [4/16] %v241, 128
        %274 = vxpose.xlu0.b32.cont [5/16] %v242, 128
        %275 = vxpose.xlu0.b32.cont [6/16] %v243, 128
        %276 = vxpose.xlu0.b32.cont [7/16] %v244, 128
        %277 = vxpose.xlu0.b32.cont [8/16] %v245, 128
        %278 = vxpose.xlu0.b32.cont [9/16] %v246, 128
        %279 = vxpose.xlu0.b32.cont [10/16] %v247, 128
        %280 = vxpose.xlu0.b32.cont [11/16] %v248, 128
        %281 = vxpose.xlu0.b32.cont [12/16] %v249, 128
        %282 = vxpose.xlu0.b32.cont [13/16] %v250, 128
        %283 = vxpose.xlu0.b32.cont [14/16] %v251, 128
        %284 = vxpose.xlu0.b32.cont [15/16] %v252, 128
        %285 = vxpose.xlu0.b32.end [16/16] %v253, 128
        %v286 = vpop.trf.xlu0
        %v287 = vpop.trf.xlu0
        %v288 = vpop.trf.xlu0
        %v289 = vpop.trf.xlu0
        %v290 = vpop.trf.xlu0
        %v291 = vpop.trf.xlu0
        %v292 = vpop.trf.xlu0
        %v293 = vpop.trf.xlu0
        %v294 = vpop.trf.xlu0
        %v295 = vpop.trf.xlu0
        %v296 = vpop.trf.xlu0
        %v297 = vpop.trf.xlu0
        %v298 = vpop.trf.xlu0
        %v299 = vpop.trf.xlu0
        %v300 = vpop.trf.xlu0
        %v301 = vpop.trf.xlu0
        %302 = vxpose.xlu0.b32.start [1/16] %v254, 128
        %303 = vxpose.xlu0.b32.cont [2/16] %v255, 128
        %304 = vxpose.xlu0.b32.cont [3/16] %v256, 128
        %305 = vxpose.xlu0.b32.cont [4/16] %v257, 128
        %306 = vxpose.xlu0.b32.cont [5/16] %v258, 128
        %307 = vxpose.xlu0.b32.cont [6/16] %v259, 128
        %308 = vxpose.xlu0.b32.cont [7/16] %v260, 128
        %309 = vxpose.xlu0.b32.cont [8/16] %v261, 128
        %310 = vxpose.xlu0.b32.cont [9/16] %v262, 128
        %311 = vxpose.xlu0.b32.cont [10/16] %v263, 128
        %312 = vxpose.xlu0.b32.cont [11/16] %v264, 128
        %313 = vxpose.xlu0.b32.cont [12/16] %v265, 128
        %314 = vxpose.xlu0.b32.cont [13/16] %v266, 128
        %315 = vxpose.xlu0.b32.cont [14/16] %v267, 128
        %316 = vxpose.xlu0.b32.cont [15/16] %v268, 128
        %317 = vxpose.xlu0.b32.end [16/16] %v269, 128
        %v318 = vpop.trf.xlu0
        %v319 = vpop.trf.xlu0
        %v320 = vpop.trf.xlu0
        %v321 = vpop.trf.xlu0
        %v322 = vpop.trf.xlu0
        %v323 = vpop.trf.xlu0
        %v324 = vpop.trf.xlu0
        %v325 = vpop.trf.xlu0
        %v326 = vpop.trf.xlu0
        %v327 = vpop.trf.xlu0
        %v328 = vpop.trf.xlu0
        %v329 = vpop.trf.xlu0
        %v330 = vpop.trf.xlu0
        %v331 = vpop.trf.xlu0
        %v332 = vpop.trf.xlu0
        %v333 = vpop.trf.xlu0
        %v334 = vadd.f32 %v206, %v286
        %v335 = vadd.f32 %v207, %v318
        %v336 = vadd.f32 %v208, %v287
        %v337 = vadd.f32 %v209, %v319
        %v338 = vadd.f32 %v210, %v288
        %v339 = vadd.f32 %v211, %v320
        %v340 = vadd.f32 %v212, %v289
        %v341 = vadd.f32 %v213, %v321
        %v342 = vadd.f32 %v214, %v290
        %v343 = vadd.f32 %v215, %v322
        %v344 = vadd.f32 %v216, %v291
        %v345 = vadd.f32 %v217, %v323
        %v346 = vadd.f32 %v218, %v292
        %v347 = vadd.f32 %v219, %v324
        %v348 = vadd.f32 %v220, %v293
        %v349 = vadd.f32 %v221, %v325
        %v350 = vadd.f32 %v222, %v294
        %v351 = vadd.f32 %v223, %v326
        %v352 = vadd.f32 %v224, %v295
        %v353 = vadd.f32 %v225, %v327
        %v354 = vadd.f32 %v226, %v296
        %v355 = vadd.f32 %v227, %v328
        %v356 = vadd.f32 %v228, %v297
        %v357 = vadd.f32 %v229, %v329
        %v358 = vadd.f32 %v230, %v298
        %v359 = vadd.f32 %v231, %v330
        %v360 = vadd.f32 %v232, %v299
        %v361 = vadd.f32 %v233, %v331
        %v362 = vadd.f32 %v234, %v300
        %v363 = vadd.f32 %v235, %v332
        %v364 = vadd.f32 %v236, %v301
        %v365 = vadd.f32 %v237, %v333
        %v366 = vmul.f32 %v334, 0.5
        %v367 = vmul.f32 %v335, 0.5
        %v368 = vmul.f32 %v336, 0.5
        %v369 = vmul.f32 %v337, 0.5
        %v370 = vmul.f32 %v338, 0.5
        %v371 = vmul.f32 %v339, 0.5
        %v372 = vmul.f32 %v340, 0.5
        %v373 = vmul.f32 %v341, 0.5
        %v374 = vmul.f32 %v342, 0.5
        %v375 = vmul.f32 %v343, 0.5
        %v376 = vmul.f32 %v344, 0.5
        %v377 = vmul.f32 %v345, 0.5
        %v378 = vmul.f32 %v346, 0.5
        %v379 = vmul.f32 %v347, 0.5
        %v380 = vmul.f32 %v348, 0.5
        %v381 = vmul.f32 %v349, 0.5
        %v382 = vmul.f32 %v350, 0.5
        %v383 = vmul.f32 %v351, 0.5
        %v384 = vmul.f32 %v352, 0.5
        %v385 = vmul.f32 %v353, 0.5
        %v386 = vmul.f32 %v354, 0.5
        %v387 = vmul.f32 %v355, 0.5
        %v388 = vmul.f32 %v356, 0.5
        %v389 = vmul.f32 %v357, 0.5
        %v390 = vmul.f32 %v358, 0.5
        %v391 = vmul.f32 %v359, 0.5
        %v392 = vmul.f32 %v360, 0.5
        %v393 = vmul.f32 %v361, 0.5
        %v394 = vmul.f32 %v362, 0.5
        %v395 = vmul.f32 %v363, 0.5
        %v396 = vmul.f32 %v364, 0.5
        %v397 = vmul.f32 %v365, 0.5
        %v398 = vmax.f32 %v366, 0.0
        %v399 = vmax.f32 %v367, 0.0
        %v400 = vmax.f32 %v368, 0.0
        %v401 = vmax.f32 %v369, 0.0
        %v402 = vmax.f32 %v370, 0.0
        %v403 = vmax.f32 %v371, 0.0
        %v404 = vmax.f32 %v372, 0.0
        %v405 = vmax.f32 %v373, 0.0
        %v406 = vmax.f32 %v374, 0.0
        %v407 = vmax.f32 %v375, 0.0
        %v408 = vmax.f32 %v376, 0.0
        %v409 = vmax.f32 %v377, 0.0
        %v410 = vmax.f32 %v378, 0.0
        %v411 = vmax.f32 %v379, 0.0
        %v412 = vmax.f32 %v380, 0.0
        %v413 = vmax.f32 %v381, 0.0
        %v414 = vmax.f32 %v382, 0.0
        %v415 = vmax.f32 %v383, 0.0
        %v416 = vmax.f32 %v384, 0.0
        %v417 = vmax.f32 %v385, 0.0
        %v418 = vmax.f32 %v386, 0.0
        %v419 = vmax.f32 %v387, 0.0
        %v420 = vmax.f32 %v388, 0.0
        %v421 = vmax.f32 %v389, 0.0
        %v422 = vmax.f32 %v390, 0.0
        %v423 = vmax.f32 %v391, 0.0
        %v424 = vmax.f32 %v392, 0.0
        %v425 = vmax.f32 %v393, 0.0
        %v426 = vmax.f32 %v394, 0.0
        %v427 = vmax.f32 %v395, 0.0
        %v428 = vmax.f32 %v396, 0.0
        %v429 = vmax.f32 %v397, 0.0
        %v430 = vadd.f32 %v398, %v399
        %431 = vadd.xlane.f32.xlu0 %v430
        %v432 = vpop.xlane.xlu0 %431
        %v433 = vadd.f32 %v400, %v401
        %434 = vadd.xlane.f32.xlu0 %v433
        %v435 = vpop.xlane.xlu0 %434
        %v436 = vadd.f32 %v402, %v403
        %437 = vadd.xlane.f32.xlu0 %v436
        %v438 = vpop.xlane.xlu0 %437
        %v439 = vadd.f32 %v404, %v405
        %440 = vadd.xlane.f32.xlu0 %v439
        %v441 = vpop.xlane.xlu0 %440
        %v442 = vadd.f32 %v406, %v407
        %443 = vadd.xlane.f32.xlu0 %v442
        %v444 = vpop.xlane.xlu0 %443
        %v445 = vadd.f32 %v408, %v409
        %446 = vadd.xlane.f32.xlu0 %v445
        %v447 = vpop.xlane.xlu0 %446
        %v448 = vadd.f32 %v410, %v411
        %449 = vadd.xlane.f32.xlu0 %v448
        %v450 = vpop.xlane.xlu0 %449
        %v451 = vadd.f32 %v412, %v413
        %452 = vadd.xlane.f32.xlu0 %v451
        %v453 = vpop.xlane.xlu0 %452
        %v454 = vadd.f32 %v414, %v415
        %455 = vadd.xlane.f32.xlu0 %v454
        %v456 = vpop.xlane.xlu0 %455
        %v457 = vadd.f32 %v416, %v417
        %458 = vadd.xlane.f32.xlu0 %v457
        %v459 = vpop.xlane.xlu0 %458
        %v460 = vadd.f32 %v418, %v419
        %461 = vadd.xlane.f32.xlu0 %v460
        %v462 = vpop.xlane.xlu0 %461
        %v463 = vadd.f32 %v420, %v421
        %464 = vadd.xlane.f32.xlu0 %v463
        %v465 = vpop.xlane.xlu0 %464
        %v466 = vadd.f32 %v422, %v423
        %467 = vadd.xlane.f32.xlu0 %v466
        %v468 = vpop.xlane.xlu0 %467
        %v469 = vadd.f32 %v424, %v425
        %470 = vadd.xlane.f32.xlu0 %v469
        %v471 = vpop.xlane.xlu0 %470
        %v472 = vadd.f32 %v426, %v427
        %473 = vadd.xlane.f32.xlu0 %v472
        %v474 = vpop.xlane.xlu0 %473
        %v475 = vadd.f32 %v428, %v429
        %476 = vadd.xlane.f32.xlu0 %v475
        %v477 = vpop.xlane.xlu0 %476
        %v478 = vadd.f32 %v432, 1.0
        %v479 = vadd.f32 %v435, 1.0
        %v480 = vadd.f32 %v438, 1.0
        %v481 = vadd.f32 %v441, 1.0
        %v482 = vadd.f32 %v444, 1.0
        %v483 = vadd.f32 %v447, 1.0
        %v484 = vadd.f32 %v450, 1.0
        %v485 = vadd.f32 %v453, 1.0
        %v486 = vadd.f32 %v456, 1.0
        %v487 = vadd.f32 %v459, 1.0
        %v488 = vadd.f32 %v462, 1.0
        %v489 = vadd.f32 %v465, 1.0
        %v490 = vadd.f32 %v468, 1.0
        %v491 = vadd.f32 %v471, 1.0
        %v492 = vadd.f32 %v474, 1.0
        %v493 = vadd.f32 %v477, 1.0
        %v494 = vrsqrt.pop %v478
        %v495 = vrsqrt.pop %v479
        %v496 = vrsqrt.pop %v480
        %v497 = vrsqrt.pop %v481
        %v498 = vrsqrt.pop %v482
        %v499 = vrsqrt.pop %v483
        %v500 = vrsqrt.pop %v484
        %v501 = vrsqrt.pop %v485
        %v502 = vrsqrt.pop %v486
        %v503 = vrsqrt.pop %v487
        %v504 = vrsqrt.pop %v488
        %v505 = vrsqrt.pop %v489
        %v506 = vrsqrt.pop %v490
        %v507 = vrsqrt.pop %v491
        %v508 = vrsqrt.pop %v492
        %v509 = vrsqrt.pop %v493
        %vm510 = vcmask 7168
        %511 = vst.msk [vmem:[%s204] sm:$0xff] %vm510, %v494
        %512 = vst.msk [vmem:[%s204 + $0x8] sm:$0xff] %vm510, %v495
        %513 = vst.msk [vmem:[%s204 + $0x10] sm:$0xff] %vm510, %v496
        %514 = vst.msk [vmem:[%s204 + $0x18] sm:$0xff] %vm510, %v497
        %515 = vst.msk [vmem:[%s204 + $0x20] sm:$0xff] %vm510, %v498
        %516 = vst.msk [vmem:[%s204 + $0x28] sm:$0xff] %vm510, %v499
        %517 = vst.msk [vmem:[%s204 + $0x30] sm:$0xff] %vm510, %v500
        %518 = vst.msk [vmem:[%s204 + $0x38] sm:$0xff] %vm510, %v501
        %519 = vst.msk [vmem:[%s204 + $0x40] sm:$0xff] %vm510, %v502
        %520 = vst.msk [vmem:[%s204 + $0x48] sm:$0xff] %vm510, %v503
        %521 = vst.msk [vmem:[%s204 + $0x50] sm:$0xff] %vm510, %v504
        %522 = vst.msk [vmem:[%s204 + $0x58] sm:$0xff] %vm510, %v505
        %523 = vst.msk [vmem:[%s204 + $0x60] sm:$0xff] %vm510, %v506
        %524 = vst.msk [vmem:[%s204 + $0x68] sm:$0xff] %vm510, %v507
        %525 = vst.msk [vmem:[%s204 + $0x70] sm:$0xff] %vm510, %v508
        %526 = vst.msk [vmem:[%s204 + $0x78] sm:$0xff] %vm510, %v509
        %s527 = smul.u32 16, %s19
        %p528 = scmp.lt.s32.totalorder %s527, 31
        %s529 = scalar_select %p528, %s527, 31
        %s530 = smul.addr %s529, 8
        %s531 = scalar_lea.vmem %s2, %s530
        // Predicated region
        $region37: #{tpu_custom_call.1} parent=27 // pred_check
          %p532 = pneg %p89
        $region38: #{tpu_custom_call.1} parent=27 // pred_check_branch
          %534 = sbr.rel (%p532) target = $region40
        $region39: #{tpu_custom_call.1} parent=27 // pred_region
          %s535 = smul.u32 16, %s19
        $region40: #{tpu_custom_call.1} parent=27 // pred_fallthru
          _
      $region28: #{tpu_custom_call.1} parent=5 // pred_fallthru
        _
      %p536 = scmp.le.s32.totalorder 2, %s14
      // Predicated region
      $region41: #{tpu_custom_call.1} parent=5 // pred_check
        %p537 = pneg %p536
      $region42: #{tpu_custom_call.1} parent=5 // pred_check_branch
        %539 = sbr.rel (%p537) target = $region44
      $region43: #{tpu_custom_call.1} parent=5 // pred_region
        %s540 = ssub.s32 %s14, 2
        // Predicated region
        $region45: #{tpu_custom_call.1} parent=43 // pred_check
          %p541 = pneg %p95
        $region46: #{tpu_custom_call.1} parent=43 // pred_check_branch
          %543 = sbr.rel (%p541) target = $region48
        $region47: #{tpu_custom_call.1} parent=43 // pred_region
          %s544 = smul.u32 16, %s20
          %p545 = scmp.lt.s32.totalorder %s544, 31
          %s546 = scalar_select %p545, %s544, 31
          %s547 = smul.addr %s546, 8
          %s548 = scalar_lea.vmem %s2, %s547
        $region48: #{tpu_custom_call.1} parent=43 // pred_fallthru
          _
      $region44: #{tpu_custom_call.1} parent=5 // pred_fallthru
        _
    $region6: #{tpu_custom_call.1} parent=1 // loop_footer
      %s18 = sadd.s32 1, %s14
    $region7: #{tpu_custom_call.1} parent=1 // loop_footer_branch
      %13 = sbr.rel target = $region3
    $region8: #{tpu_custom_call.1} parent=1 // loop_exit
      _
    %549 = vsyncpa [#allocation3], 1
    %s550 = scalar_lea.sflag [#allocation3], 1
    %551 = vsyncpa %s550, 1
    %552 = vsyncpa [#allocation5], 1
    %s553 = scalar_lea.sflag [#allocation5], 1
    %554 = vsyncpa %s553, 1

</llo_original>
